<compile_context>
chip_gen: v7x
topology: tpu7x:2x2x1
jax: 0.10.0
libtpu: 0.0.40
codegen_flags: <defaults>
</compile_context>

<pallas_src>
import math

import jax
import jax.numpy as jnp
from jax.experimental import pallas as pl
from jax.experimental.pallas import tpu as pltpu


def _round_up(x, m):
    return ((x + m - 1) // m) * m


def _itemsize(dt):
    return jnp.dtype(dt).itemsize


def _vmem_limit_and_budget():
    """Per-generation VMEM sizing.

    Physical VMEM: 128 MiB (v5e/v6e), 64 MiB per TensorCore (v7x).  Leave
    headroom for compiler-internal scratch, then budget tile footprints at
    ~90% of the requested scoped limit.
    """
    try:
        cap = int(pltpu.get_tpu_info().vmem_capacity_bytes)
    except Exception:
        cap = 64 * 1024 * 1024  # conservative default (v7x per-core size)
    limit = min(int(cap * 0.85), 100 * 1024 * 1024)
    budget = int(limit * 0.90)
    return limit, budget


# --------------------------------------------------------------------------
# Fused path: support kept resident in VMEM, zero support HBM traffic.
# --------------------------------------------------------------------------
def _make_fused_kernel(has_bias):
    def kernel(*refs):
        if has_bias:
            x_ref, w_ref, adj_ref, b_ref, o_ref, sup_ref = refs
        else:
            x_ref, w_ref, adj_ref, o_ref, sup_ref = refs
            b_ref = None

        # Fill the per-batch support scratch once (row-tile axis i == 0).
        @pl.when(pl.program_id(1) == 0)
        def _():
            sup_ref[...] = jnp.dot(
                x_ref[...], w_ref[...], preferred_element_type=jnp.float32
            ).astype(sup_ref.dtype)

        acc = jnp.dot(
            adj_ref[...], sup_ref[...], preferred_element_type=jnp.float32
        )
        if b_ref is not None:
            acc = acc + b_ref[...]
        o_ref[...] = acc.astype(o_ref.dtype)

    return kernel


def _fused_row_tile(x, adj, weight, budget):
    """Pick an adj row tile for the fused path, or None if it can't fit VMEM."""
    B, N, F_in = x.shape
    F_out = weight.shape[1]
    bx = _itemsize(x.dtype)
    badj = _itemsize(adj.dtype)
    bw = _itemsize(weight.dtype)
    bout = bx
    bsup = bx

    base = (
        2 * N * F_in * bx        # x[b] block (double buffered)
        + 2 * F_in * F_out * bw  # weight block (resident, counted x2 to be safe)
        + N * F_out * bsup       # support scratch
        + 2 * F_out * 4          # bias
    )

    def fits(t):
        return base + 2 * t * N * badj + 2 * t * F_out * bout <= budget

    start = min(N, 512)
    start -= start % 8
    cands = [t for t in range(start, 7, -8) if N % t == 0]
    if N not in cands:
        cands.append(N)  # ragged small N: one full-row block per batch
    for t in cands:      # largest fitting tile first
        if fits(t):
            return t
    return None


def _fused_path(x, adj, weight, bias, tm, vmem_limit):
    B, N, F_in = x.shape
    F_out = weight.shape[1]
    out_dtype = x.dtype
    grid = (B, N // tm)

    in_specs = [
        # x[b] — block index constant across i, so Pallas DMAs it once per batch.
        pl.BlockSpec((None, N, F_in), lambda b, i: (b, 0, 0)),
        pl.BlockSpec((F_in, F_out), lambda b, i: (0, 0)),      # weight, resident
        pl.BlockSpec((None, tm, N), lambda b, i: (b, i, 0)),    # adj row tile (streamed)
    ]
    args = [x, weight, adj]
    if bias is not None:
        in_specs.append(pl.BlockSpec((1, F_out), lambda b, i: (0, 0)))
        args.append(bias.reshape(1, F_out).astype(jnp.float32))

    out_spec = pl.BlockSpec((None, tm, F_out), lambda b, i: (b, i, 0))

    return pl.pallas_call(
        _make_fused_kernel(bias is not None),
        out_shape=jax.ShapeDtypeStruct((B, N, F_out), out_dtype),
        grid=grid,
        in_specs=in_specs,
        out_specs=out_spec,
        scratch_shapes=[pltpu.VMEM((N, F_out), x.dtype)],
        compiler_params=pltpu.CompilerParams(
            # The row-tile axis must be "arbitrary": the support scratch is
            # written at i == 0 and reused by later row tiles of the same
            # batch.  Batch axis stays "parallel" (megacore on v7x when B>1).
            dimension_semantics=("parallel", "arbitrary"),
            vmem_limit_bytes=vmem_limit,
        ),
    )(*args)


# --------------------------------------------------------------------------
# Fallback path: two-stage tiled (large N / F_in / F_out), padded to 128.
# --------------------------------------------------------------------------
def _stage1_kernel(x_ref, w_ref, o_ref):
    o_ref[...] = jnp.dot(
        x_ref[...], w_ref[...], preferred_element_type=jnp.float32
    ).astype(o_ref.dtype)


def _make_stage2_kernel(has_bias, f_out):
    def kernel(*refs):
        if has_bias:
            adj_ref, s_ref, b_ref, o_ref, acc_ref = refs
        else:
            adj_ref, s_ref, o_ref, acc_ref = refs
            b_ref = None
        k = pl.program_id(2)

        @pl.when(k == 0)
        def _():
            acc_ref[...] = jnp.zeros_like(acc_ref)

        acc_ref[...] += jnp.dot(
            adj_ref[...], s_ref[...], preferred_element_type=jnp.float32
        )

        @pl.when(k == pl.num_programs(2) - 1)
        def _():
            res = acc_ref[:, :f_out]  # drop padded feature columns (single masked store)
            if b_ref is not None:
                res = res + b_ref[...]
            o_ref[...] = res.astype(o_ref.dtype)

    return kernel


def _tiled_path(x, adj, weight, bias, vmem_limit, budget):
    B, N, F_in = x.shape
    F_out = weight.shape[1]
    out_dtype = x.dtype
    bx = _itemsize(x.dtype)
    badj = _itemsize(adj.dtype)
    bw = _itemsize(weight.dtype)
    bsup = bx
    bout = _itemsize(out_dtype)

    # Pad ragged sizes to 128-multiples (zero padding is numerically inert here)
    # instead of falling back to whole-dimension blocks.
    N_pad = _round_up(N, 128)
    F_pad = _round_up(F_out, 128)
    x_p = x if N_pad == N else jnp.pad(x, ((0, 0), (0, N_pad - N), (0, 0)))
    adj_p = adj if N_pad == N else jnp.pad(adj, ((0, 0), (0, N_pad - N), (0, N_pad - N)))
    w_p = weight if F_pad == F_out else jnp.pad(weight, ((0, 0), (0, F_pad - F_out)))

    # ---- stage 1: support = (B*N_pad, F_in) @ (F_in, F_pad), one big matmul ----
    M = B * N_pad
    x2d = x_p.reshape(M, F_in)
    tm_s = 128
    for t in range(min(M, 2048), 127, -128):
        if M % t == 0 and (2 * t * F_in * bx + 2 * F_in * F_pad * bw
                           + 2 * t * F_pad * bsup) <= budget:
            tm_s = t
            break
    # TODO(synk): K-tile over F_in if F_in is so large that even tm_s=128 overflows VMEM.

    support2d = pl.pallas_call(
        _stage1_kernel,
        out_shape=jax.ShapeDtypeStruct((M, F_pad), x.dtype),
        grid=(M // tm_s,),
        in_specs=[
            pl.BlockSpec((tm_s, F_in), lambda i: (i, 0)),
            pl.BlockSpec((F_in, F_pad), lambda i: (0, 0)),
        ],
        out_specs=pl.BlockSpec((tm_s, F_pad), lambda i: (i, 0)),
        compiler_params=pltpu.CompilerParams(
            dimension_semantics=("parallel",),
            vmem_limit_bytes=vmem_limit,
        ),
    )(x2d, w_p)
    support = support2d.reshape(B, N_pad, F_pad)

    # ---- stage 2: out[b] = adj_p[b] @ support[b] ----
    def footprint(tm, tk):
        return (2 * tm * tk * badj + 2 * tk * F_pad * bsup
                + 2 * tm * F_pad * bout + tm * F_pad * 4 + 2 * F_out * 4)

    # Contraction tile: prefer the full N_pad so each support[b] slab is DMA'd
    # exactly once per batch (its block index then stops changing across i).
    tk = 128
    for t in range(N_pad, 127, -128):
        if N_pad % t == 0 and footprint(128, t) <= budget:
            tk = t
            break
    tm = 128
    for t in range(min(N_pad, 1024), 127, -128):
        if N_pad % t == 0 and footprint(t, tk) <= budget:
            tm = t
            break

    grid = (B, N_pad // tm, N_pad // tk)
    in_specs = [
        pl.BlockSpec((None, tm, tk), lambda b, i, k: (b, i, k)),
        pl.BlockSpec((None, tk, F_pad), lambda b, i, k: (b, k, 0)),
    ]
    args = [adj_p, support]
    if bias is not None:
        in_specs.append(pl.BlockSpec((1, F_out), lambda b, i, k: (0, 0)))
        args.append(bias.reshape(1, F_out).astype(jnp.float32))

    # Output declared with the UNPADDED feature dim: no wrapper-side feature
    # slice (extra HBM pass); padded columns are dropped in the k-epilogue.
    out_spec = pl.BlockSpec((None, tm, F_out), lambda b, i, k: (b, i, 0))

    out_p = pl.pallas_call(
        _make_stage2_kernel(bias is not None, F_out),
        out_shape=jax.ShapeDtypeStruct((B, N_pad, F_out), out_dtype),
        grid=grid,
        in_specs=in_specs,
        out_specs=out_spec,
        scratch_shapes=[pltpu.VMEM((tm, F_pad), jnp.float32)],
        compiler_params=pltpu.CompilerParams(
            dimension_semantics=("parallel", "parallel", "arbitrary"),
            vmem_limit_bytes=vmem_limit,
        ),
    )(*args)

    return out_p if N_pad == N else out_p[:, :N, :]


# --------------------------------------------------------------------------
# Public wrapper
# --------------------------------------------------------------------------
def graph_convolution(x, adj, weight, bias=None, *, force_tiled=False):
    """Pallas implementation of GraphConvolution.forward.

    x:      (B, N, F_in)
    adj:    (B, N, N)
    weight: (F_in, F_out)
    bias:   (1, 1, F_out) or None
    returns (B, N, F_out)
    """
    assert x.ndim == 3 and adj.ndim == 3 and weight.ndim == 2
    vmem_limit, budget = _vmem_limit_and_budget()

    if not force_tiled:
        tm = _fused_row_tile(x, adj, weight, budget)
        if tm is not None:
            return _fused_path(x, adj, weight, bias, tm, vmem_limit)
    return _tiled_path(x, adj, weight, bias, vmem_limit, budget)


if __name__ == "__main__":
    # Small shapes consistent with the module's forward.
    B, N = 2, 16
    in_features, out_features = 8, 32

    key = jax.random.PRNGKey(0)
    kx, kadj, kw, kb = jax.random.split(key, 4)

    # Deterministic parameter init matching reset_parameters():
    # uniform(-stdv, stdv), stdv = 1/sqrt(out_features)
    stdv = 1.0 / math.sqrt(out_features)
    weight = jax.random.uniform(
        kw, (in_features, out_features), jnp.float32, minval=-stdv, maxval=stdv
    )
    bias = jax.random.uniform(
        kb, (1, 1, out_features), jnp.float32, minval=-stdv, maxval=stdv
    )

    x = jax.random.normal(kx, (B, N, in_features), jnp.float32)
    adj = jax.random.uniform(kadj, (B, N, N), jnp.float32)

    def reference(xv, adjv, w, b):
        out = jnp.matmul(adjv, jnp.matmul(xv, w))
        return out if b is None else out + b

    # Fused (primary) path, bias and no-bias variants.
    for b in (bias, None):
        out = jax.block_until_ready(graph_convolution(x, adj, weight, b))
        ref = reference(x, adj, weight, b)
        assert out.shape == (B, N, out_features)
        assert jnp.allclose(out, ref, atol=1e-5, rtol=1e-5)

    # Padded two-stage fallback path, exercised explicitly at small shapes.
    out_t = jax.block_until_ready(
        graph_convolution(x, adj, weight, bias, force_tiled=True)
    )
    ref_t = reference(x, adj, weight, bias)
    assert out_t.shape == (B, N, out_features)
    assert jnp.allclose(out_t, ref_t, atol=1e-5, rtol=1e-5)

    print("KERNEL_OK")
</pallas_src>

<mosaic_0001>
module attributes {stable_mosaic.version = 11 : i64} {
  func.func @kernel(%arg0: i32, %arg1: i32, %arg2: memref<1x16x8xf32, #tpu.memory_space<vmem>>, %arg3: memref<8x32xf32, #tpu.memory_space<vmem>>, %arg4: memref<1x16x16xf32, #tpu.memory_space<vmem>>, %arg5: memref<1x32xf32, #tpu.memory_space<vmem>>, %arg6: memref<1x16x32xf32, #tpu.memory_space<vmem>>, %arg7: memref<16x32xf32, #tpu.memory_space<vmem>>) attributes {dimension_semantics = [#tpu.dimension_semantics<parallel>, #tpu.dimension_semantics<arbitrary>], iteration_bounds = array<i64: 2, 1>, scalar_prefetch = 0 : i64, scratch_operands = 1 : i64, tpu.core_type = #tpu.core_type<tc>, window_params = [{transform_indices = @transform_0, window_bounds = array<i64: 1, 16, 8>}, {pipeline_mode = #tpu.pipeline_mode<synchronous>, transform_indices = @transform_1, window_bounds = array<i64: 8, 32>}, {transform_indices = @transform_2, window_bounds = array<i64: 1, 16, 16>}, {pipeline_mode = #tpu.pipeline_mode<synchronous>, transform_indices = @transform_3, window_bounds = array<i64: 1, 32>}, {transform_indices = @transform_4, window_bounds = array<i64: 1, 16, 32>}]} {
    %c0_i32 = arith.constant 0 : i32
    %0 = arith.cmpi eq, %arg1, %c0_i32 : i32
    %1 = arith.extui %0 : i1 to i32
    %c0_i32_0 = arith.constant 0 : i32
    %2 = arith.cmpi ne, %1, %c0_i32_0 : i32
    scf.if %2 {
      %c0_10 = arith.constant 0 : index
      %c0_11 = arith.constant 0 : index
      %c0_12 = arith.constant 0 : index
      %13 = vector.load %arg2[%c0_10, %c0_11, %c0_12] : memref<1x16x8xf32, #tpu.memory_space<vmem>>, vector<1x16x8xf32>
      %14 = vector.shape_cast %13 : vector<1x16x8xf32> to vector<16x8xf32>
      %c0_13 = arith.constant 0 : index
      %c0_14 = arith.constant 0 : index
      %15 = vector.load %arg3[%c0_13, %c0_14] : memref<8x32xf32, #tpu.memory_space<vmem>>, vector<8x32xf32>
      %cst_15 = arith.constant dense<0.000000e+00> : vector<16x32xf32>
      %16 = tpu.matmul %14, %15, %cst_15 {dimension_numbers = #tpu.dot_dimension_numbers<[1], [0], [0], [1], [0, 0, 1, 1], [], []>} : vector<16x8xf32>, vector<8x32xf32>, vector<16x32xf32> -> vector<16x32xf32>
      %c0_16 = arith.constant 0 : index
      %c0_17 = arith.constant 0 : index
      %17 = vector.load %arg7[%c0_16, %c0_17] : memref<16x32xf32, #tpu.memory_space<vmem>>, vector<16x32xf32>
      tpu.vector_store %arg7[%c0_16, %c0_17], %16 {strides = array<i32>} : memref<16x32xf32, #tpu.memory_space<vmem>>, vector<16x32xf32>,
    } else {
    }
    %c0 = arith.constant 0 : index
    %c0_1 = arith.constant 0 : index
    %c0_2 = arith.constant 0 : index
    %3 = vector.load %arg4[%c0, %c0_1, %c0_2] : memref<1x16x16xf32, #tpu.memory_space<vmem>>, vector<1x16x16xf32>
    %4 = vector.shape_cast %3 : vector<1x16x16xf32> to vector<16x16xf32>
    %c0_3 = arith.constant 0 : index
    %c0_4 = arith.constant 0 : index
    %5 = vector.load %arg7[%c0_3, %c0_4] : memref<16x32xf32, #tpu.memory_space<vmem>>, vector<16x32xf32>
    %cst = arith.constant dense<0.000000e+00> : vector<16x32xf32>
    %6 = tpu.matmul %4, %5, %cst {dimension_numbers = #tpu.dot_dimension_numbers<[1], [0], [0], [1], [0, 0, 1, 1], [], []>} : vector<16x16xf32>, vector<16x32xf32>, vector<16x32xf32> -> vector<16x32xf32>
    %c0_5 = arith.constant 0 : index
    %c0_6 = arith.constant 0 : index
    %7 = vector.load %arg5[%c0_5, %c0_6] : memref<1x32xf32, #tpu.memory_space<vmem>>, vector<1x32xf32>
    %8 = vector.broadcast %7 : vector<1x32xf32> to vector<16x32xf32>
    %9 = arith.addf %6, %8 : vector<16x32xf32>
    %c0_7 = arith.constant 0 : index
    %c0_8 = arith.constant 0 : index
    %c0_9 = arith.constant 0 : index
    %10 = vector.load %arg6[%c0_7, %c0_8, %c0_9] : memref<1x16x32xf32, #tpu.memory_space<vmem>>, vector<1x16x32xf32>
    %11 = vector.shape_cast %10 : vector<1x16x32xf32> to vector<16x32xf32>
    %12 = vector.shape_cast %9 : vector<16x32xf32> to vector<1x16x32xf32>
    tpu.vector_store %arg6[%c0_7, %c0_8, %c0_9], %12 {strides = array<i32>} : memref<1x16x32xf32, #tpu.memory_space<vmem>>, vector<1x16x32xf32>,
    return
  }
  func.func @transform_0(%arg0: i32, %arg1: i32) -> (i32, i32, i32) {
    %c0_i32 = arith.constant 0 : i32
    %c0_i32_0 = arith.constant 0 : i32
    %c0_i32_1 = arith.constant 0 : i32
    return %arg0, %c0_i32, %c0_i32_0 : i32, i32, i32
  }
  func.func @transform_1(%arg0: i32, %arg1: i32) -> (i32, i32) {
    %c0_i32 = arith.constant 0 : i32
    %c0_i32_0 = arith.constant 0 : i32
    %c0_i32_1 = arith.constant 0 : i32
    return %c0_i32, %c0_i32_0 : i32, i32
  }
  func.func @transform_2(%arg0: i32, %arg1: i32) -> (i32, i32, i32) {
    %c0_i32 = arith.constant 0 : i32
    %c0_i32_0 = arith.constant 0 : i32
    return %arg0, %arg1, %c0_i32 : i32, i32, i32
  }
  func.func @transform_3(%arg0: i32, %arg1: i32) -> (i32, i32) {
    %c0_i32 = arith.constant 0 : i32
    %c0_i32_0 = arith.constant 0 : i32
    %c0_i32_1 = arith.constant 0 : i32
    return %c0_i32, %c0_i32_0 : i32, i32
  }
  func.func @transform_4(%arg0: i32, %arg1: i32) -> (i32, i32, i32) {
    %c0_i32 = arith.constant 0 : i32
    %c0_i32_0 = arith.constant 0 : i32
    return %arg0, %arg1, %c0_i32 : i32, i32, i32
  }
}

</mosaic_0001>

<llo_original>
// kernel: tpu_custom_call.1
$region0: #{tpu_custom_call.1}
  #allocation0 [shape = 'u32[]', space=smem, size = 0x4, offset = 0x4, fixed_abs, tag = 'smem constant byte address 0x4 - core index']
  #allocation1 [shape = 'u32[144,128]{1,0:T(1,128)}', space=vmem, size = 0x12000, scoped, tag = 'internal scratch']
  #allocation2 [shape = 'f32[16,32]{1,0:T(8,128)}', space=vmem, size = 0x2000, scoped, tag = 'scratch operand']
  %s0 = inlined_call_operand.vmem [shape: f32[2,16,8], index: 0, kind: input, shape index: {}]
  %s1 = inlined_call_operand.vmem [shape: f32[8,32], index: 1, kind: input, shape index: {}]
  %s2 = inlined_call_operand.vmem [shape: f32[2,16,16], index: 2, kind: input, shape index: {}]
  %s3 = inlined_call_operand.vmem [shape: f32[1,32], index: 3, kind: input, shape index: {}]
  %s4 = inlined_call_operand.hbm [shape: f32[2,16,32], index: 4, kind: output, shape index: {}]
  %s5 = sld [smem:[#allocation0]]
  $region53: #{tpu_custom_call.1} parent=0
    _
  %s7 = ssub.s32 1, %s5
  %s8 = scalar_select 0, %s7, %s5
  $region1: #{tpu_custom_call.1} parent=0
    #allocation3 [shape = 'u8[16384]{0}', space=vmem, size = 0x4000, scoped, tag = 'output window, operand 0']
    #allocation4 [shape = 's32[2]{0}', space=sflag, size = 0x8, scoped, tag = 'scoped memory for tpu_custom_call.1']
    %9 = vsyncpa [#allocation4], 0
    %s10 = scalar_lea.sflag [#allocation4], 1
    %11 = vsyncpa %s10, 0
    loop: start=0, step=1, limit=4
    $region2: #{tpu_custom_call.1} parent=1 // loop_pre_header
      _
    $region3: #{tpu_custom_call.1} parent=1 // loop_header
      %s13 = sphi 0, %s17
      %p14 = scmp.ge.s32.totalorder %s13, 4
      %s20 = sphi 0, %s32
      %s21 = sphi 0, %s28
      %s22 = sphi 0, %s20
      %s23 = sphi 0, %s21
      %s24 = sphi 0, %s22
      %s25 = sphi 0, %s23
      %s35 = sphi 0, %s37
      %s38 = sphi 0, %s35
      %s39 = sphi 0, %s38
      %s55 = sphi 0, %s39
      %s59 = sphi 0, %s59
      %s61 = sphi 0, %s59
      %s62 = sphi 0, %s61
      %s76 = sphi 0, %s62
      %s84 = sphi 0, %s86
      %s87 = sphi 0, %s84
      %s88 = sphi 0, %s87
      %s104 = sphi 0, %s88
      %s108 = sphi 0, %s108
      %s110 = sphi 0, %s108
      %s111 = sphi 0, %s110
      %s125 = sphi 0, %s111
      %s133 = sphi 0, %s135
      %s136 = sphi 0, %s133
      %s137 = sphi 0, %s136
      %s153 = sphi 0, %s137
    $region4: #{tpu_custom_call.1} parent=1 // loop_header_branch
      %16 = sbr.rel (%p14) target = $region8
    $region5: #{tpu_custom_call.1} parent=1 // loop_body
      %s18 = ssub.s32 %s13, 1
      %s19 = ssub.s32 %s13, 2
      %s26 = sadd.s32 1, %s21
      %p27 = scmp.ge.s32.totalorder %s26, 1
      %s28 = scalar_select %p27, 0, %s26
      %s29 = sadd.s32 1, %s20
      %s30 = scalar_select %p27, %s29, %s20
      %p31 = scmp.ge.s32.totalorder %s30, 2
      %s32 = scalar_select %p31, 0, %s30
      %s33 = ssub.s32 %s20, %s32
      %p34 = scmp.eq.s32.totalorder %s33, 0
      %s36 = sadd.s32 %s35, 1
      %s37 = scalar_select %p34, %s35, %s36
      %p40 = pneg %p34
      %p41 = scmp.eq.s32.totalorder %s13, 1
      %p42 = por %p40, %p41
      %p43 = scmp.ne.s32.totalorder %s35, %s38
      %p44 = scmp.eq.s32.totalorder %s13, 0
      %p45 = por %p43, %p44
      %p46 = scmp.ne.s32.totalorder %s35, %s38
      %p47 = scmp.eq.s32.totalorder %s18, 1
      %p48 = por %p46, %p47
      %p49 = scmp.ne.s32.totalorder %s38, %s39
      %p50 = scmp.eq.s32.totalorder %s18, 0
      %p51 = por %p49, %p50
      %p52 = scmp.ne.s32.totalorder %s38, %s39
      %p53 = scmp.eq.s32.totalorder %s19, 1
      %p54 = por %p52, %p53
      %p56 = scmp.ne.s32.totalorder %s39, %s55
      %p57 = scmp.eq.s32.totalorder %s19, 0
      %p58 = por %p56, %p57
      %s60 = sadd.s32 %s59, 1
      %p63 = scmp.eq.s32.totalorder %s13, 1
      %p64 = scmp.ne.s32.totalorder %s59, %s61
      %p65 = scmp.eq.s32.totalorder %s13, 0
      %p66 = por %p64, %p65
      %p67 = scmp.ne.s32.totalorder %s59, %s61
      %p68 = scmp.eq.s32.totalorder %s18, 1
      %p69 = por %p67, %p68
      %p70 = scmp.ne.s32.totalorder %s61, %s62
      %p71 = scmp.eq.s32.totalorder %s18, 0
      %p72 = por %p70, %p71
      %p73 = scmp.ne.s32.totalorder %s61, %s62
      %p74 = scmp.eq.s32.totalorder %s19, 1
      %p75 = por %p73, %p74
      %p77 = scmp.ne.s32.totalorder %s62, %s76
      %p78 = scmp.eq.s32.totalorder %s19, 0
      %p79 = por %p77, %p78
      %s80 = ssub.s32 %s20, %s32
      %s81 = ssub.s32 %s21, %s28
      %s82 = sor.u32 %s80, %s81
      %p83 = scmp.eq.s32.totalorder %s82, 0
      %s85 = sadd.s32 %s84, 1
      %s86 = scalar_select %p83, %s84, %s85
      %p89 = pneg %p83
      %p90 = scmp.eq.s32.totalorder %s13, 1
      %p91 = por %p89, %p90
      %p92 = scmp.ne.s32.totalorder %s84, %s87
      %p93 = scmp.eq.s32.totalorder %s13, 0
      %p94 = por %p92, %p93
      %p95 = scmp.ne.s32.totalorder %s84, %s87
      %p96 = scmp.eq.s32.totalorder %s18, 1
      %p97 = por %p95, %p96
      %p98 = scmp.ne.s32.totalorder %s87, %s88
      %p99 = scmp.eq.s32.totalorder %s18, 0
      %p100 = por %p98, %p99
      %p101 = scmp.ne.s32.totalorder %s87, %s88
      %p102 = scmp.eq.s32.totalorder %s19, 1
      %p103 = por %p101, %p102
      %p105 = scmp.ne.s32.totalorder %s88, %s104
      %p106 = scmp.eq.s32.totalorder %s19, 0
      %p107 = por %p105, %p106
      %s109 = sadd.s32 %s108, 1
      %p112 = scmp.eq.s32.totalorder %s13, 1
      %p113 = scmp.ne.s32.totalorder %s108, %s110
      %p114 = scmp.eq.s32.totalorder %s13, 0
      %p115 = por %p113, %p114
      %p116 = scmp.ne.s32.totalorder %s108, %s110
      %p117 = scmp.eq.s32.totalorder %s18, 1
      %p118 = por %p116, %p117
      %p119 = scmp.ne.s32.totalorder %s110, %s111
      %p120 = scmp.eq.s32.totalorder %s18, 0
      %p121 = por %p119, %p120
      %p122 = scmp.ne.s32.totalorder %s110, %s111
      %p123 = scmp.eq.s32.totalorder %s19, 1
      %p124 = por %p122, %p123
      %p126 = scmp.ne.s32.totalorder %s111, %s125
      %p127 = scmp.eq.s32.totalorder %s19, 0
      %p128 = por %p126, %p127
      %s129 = ssub.s32 %s20, %s32
      %s130 = ssub.s32 %s21, %s28
      %s131 = sor.u32 %s129, %s130
      %p132 = scmp.eq.s32.totalorder %s131, 0
      %s134 = sadd.s32 %s133, 1
      %s135 = scalar_select %p132, %s133, %s134
      %p138 = pneg %p132
      %p139 = scmp.eq.s32.totalorder %s13, 1
      %p140 = por %p138, %p139
      %p141 = scmp.ne.s32.totalorder %s133, %s136
      %p142 = scmp.eq.s32.totalorder %s13, 0
      %p143 = por %p141, %p142
      %p144 = scmp.ne.s32.totalorder %s133, %s136
      %p145 = scmp.eq.s32.totalorder %s18, 1
      %p146 = por %p144, %p145
      %p147 = scmp.ne.s32.totalorder %s136, %s137
      %p148 = scmp.eq.s32.totalorder %s18, 0
      %p149 = por %p147, %p148
      %p150 = scmp.ne.s32.totalorder %s136, %s137
      %p151 = scmp.eq.s32.totalorder %s19, 1
      %p152 = por %p150, %p151
      %p154 = scmp.ne.s32.totalorder %s137, %s153
      %p155 = scmp.eq.s32.totalorder %s19, 0
      %p156 = por %p154, %p155
      %p157 = scmp.le.s32.totalorder 1, %s13
      %p158 = scmp.lt.s32.totalorder %s13, 3
      %p159 = pnand %p157, %p158
      %p160 = pneg %p159
      // Predicated region
      $region9: #{tpu_custom_call.1} parent=5 // pred_check
        _
      $region10: #{tpu_custom_call.1} parent=5 // pred_check_branch
        %162 = sbr.rel (%p159) target = $region12
      $region11: #{tpu_custom_call.1} parent=5 // pred_region
        %s163 = ssub.s32 %s13, 1
        // Predicated region
        $region13: #{tpu_custom_call.1} parent=11 // pred_check
          %p164 = pneg %p72
        $region14: #{tpu_custom_call.1} parent=11 // pred_check_branch
          %166 = sbr.rel (%p164) target = $region16
        $region15: #{tpu_custom_call.1} parent=11 // pred_region
          _
        $region16: #{tpu_custom_call.1} parent=11 // pred_fallthru
          _
        // Predicated region
        $region17: #{tpu_custom_call.1} parent=11 // pred_check
          %p167 = pneg %p121
        $region18: #{tpu_custom_call.1} parent=11 // pred_check_branch
          %169 = sbr.rel (%p167) target = $region20
        $region19: #{tpu_custom_call.1} parent=11 // pred_region
          _
        $region20: #{tpu_custom_call.1} parent=11 // pred_fallthru
          _
      $region12: #{tpu_custom_call.1} parent=5 // pred_fallthru
        _
      %p170 = scmp.lt.s32.totalorder %s13, 2
      // Predicated region
      $region21: #{tpu_custom_call.1} parent=5 // pred_check
        %p171 = pneg %p170
      $region22: #{tpu_custom_call.1} parent=5 // pred_check_branch
        %173 = sbr.rel (%p171) target = $region24
      $region23: #{tpu_custom_call.1} parent=5 // pred_region
        // Predicated region
        $region25: #{tpu_custom_call.1} parent=23 // pred_check
          %p174 = pneg %p45
        $region26: #{tpu_custom_call.1} parent=23 // pred_check_branch
          %176 = sbr.rel (%p174) target = $region28
        $region27: #{tpu_custom_call.1} parent=23 // pred_region
          %p177 = scmp.lt.s32.totalorder %s20, 1
          %s178 = scalar_select %p177, %s20, 1
          %s179 = smul.addr %s178, 2
          %s180 = smul.addr %s179, 8
          %s181 = scalar_lea.vmem %s0, %s180
        $region28: #{tpu_custom_call.1} parent=23 // pred_fallthru
          _
        // Predicated region
        $region29: #{tpu_custom_call.1} parent=23 // pred_check
          %p182 = pneg %p94
        $region30: #{tpu_custom_call.1} parent=23 // pred_check_branch
          %184 = sbr.rel (%p182) target = $region32
        $region31: #{tpu_custom_call.1} parent=23 // pred_region
          %s185 = smul.u32 2, %s21
          %p186 = scmp.lt.s32.totalorder %s20, 1
          %s187 = scalar_select %p186, %s20, 1
          %p188 = scmp.lt.s32.totalorder %s185, 1
          %s189 = scalar_select %p188, %s185, 1
          %s190 = smul.addr %s187, 2
          %s191 = sadd.s32 %s189, %s190
          %s192 = smul.addr %s191, 8
          %s193 = scalar_lea.vmem %s2, %s192
          %s194 = smul.u32 2, %s21
        $region32: #{tpu_custom_call.1} parent=23 // pred_fallthru
          _
      $region24: #{tpu_custom_call.1} parent=5 // pred_fallthru
        _
      %p195 = scmp.le.s32.totalorder 1, %s13
      %p196 = scmp.lt.s32.totalorder %s13, 3
      %p197 = pnand %p195, %p196
      %p198 = pneg %p197
      // Predicated region
      $region33: #{tpu_custom_call.1} parent=5 // pred_check
        _
      $region34: #{tpu_custom_call.1} parent=5 // pred_check_branch
        %200 = sbr.rel (%p197) target = $region36
      $region35: #{tpu_custom_call.1} parent=5 // pred_region
        %s201 = ssub.s32 %s13, 1
        %p202 = scmp.lt.s32.totalorder %s22, 1
        %s203 = scalar_select %p202, %s22, 1
        %s204 = smul.addr %s203, 2
        %s205 = smul.addr %s204, 8
        %s206 = scalar_lea.vmem %s0, %s205
        %p207 = pneg %p51
        %p208 = pneg %p48
        %p209 = pneg %p72
        %p210 = pneg %p69
        %s211 = smul.u32 2, %s23
        %p212 = scmp.lt.s32.totalorder %s22, 1
        %s213 = scalar_select %p212, %s22, 1
        %p214 = scmp.lt.s32.totalorder %s211, 1
        %s215 = scalar_select %p214, %s211, 1
        %s216 = smul.addr %s213, 2
        %s217 = sadd.s32 %s215, %s216
        %s218 = smul.addr %s217, 8
        %s219 = scalar_lea.vmem %s2, %s218
        %p220 = pneg %p100
        %p221 = pneg %p97
        %p222 = pneg %p121
        %p223 = pneg %p118
        %p224 = pneg %p149
        %p225 = pneg %p146
        %s226 = sand.u32 %s136, 1
        %s227 = scalar_lea.sflag [#allocation4], %s226
        %s228 = sand.u32 %s136, 1
        %s229 = smul.addr %s228, 16
        %s230 = scalar_lea.vmem [#allocation3], %s229
        %p231 = scmp.lt.s32.totalorder %s22, 1
        %s232 = scalar_select %p231, %s22, 1
        %s233 = smul.addr %s232, 2
        %s234 = smul.addr %s233, 8
        %s235 = scalar_lea.vmem %s0, %s234
        %s236 = smul.u32 2, %s23
        %p237 = scmp.lt.s32.totalorder %s22, 1
        %s238 = scalar_select %p237, %s22, 1
        %p239 = scmp.lt.s32.totalorder %s236, 1
        %s240 = scalar_select %p239, %s236, 1
        %s241 = smul.addr %s238, 2
        %s242 = sadd.s32 %s240, %s241
        %s243 = smul.addr %s242, 8
        %s244 = scalar_lea.vmem %s2, %s243
        %s245 = smul.u32 2, %s23
        %s246 = smul.u32 2, %s23
        %p247 = scmp.eq.s32.totalorder %s23, 0
        // Predicated region
        $region37: #{tpu_custom_call.1} parent=35 // pred_check
          %p248 = pneg %p247
        $region38: #{tpu_custom_call.1} parent=35 // pred_check_branch
          %250 = sbr.rel (%p248) target = $region40
        $region39: #{tpu_custom_call.1} parent=35 // pred_region
          %v251 = vld [vmem:[%s235] sm:$0xff]
          %v252 = vld [vmem:[%s235 + $0x8] sm:$0xff]
          %v253 = vld [vmem:[%s1] sm:$0xff]
          %vm254 = vcmask 64512
          %v256 = vsel %vm254, %v251, 0
          %v259 = vsel %vm254, %v252, 0
          %261 = vmatprep.subr.mxu0 0.0
          %262 = vmatpush1.msra.mxu0 %v253
          %263 = vmatprep.subr.mxu0 0.0
          %264 = vmatpush1.msra.mxu0 0.0
          %265 = vmatprep.subr.mxu0 0.0
          %266 = vmatpush1.msra.mxu0 0.0
          %267 = vmatprep.subr.mxu0 0.0
          %268 = vmatpush1.msra.mxu0 0.0
          %269 = vmatprep.subr.mxu0 0.0
          %270 = vmatpush1.msra.mxu0 0.0
          %271 = vmatprep.subr.mxu0 0.0
          %272 = vmatpush1.msra.mxu0 0.0
          %273 = vmatprep.subr.mxu0 0.0
          %274 = vmatpush1.msra.mxu0 0.0
          %275 = vmatprep.subr.mxu0 0.0
          %276 = vmatpush1.msra.mxu0 0.0
          %277 = vmatprep.subr.mxu0 0.0
          %278 = vmatpush1.msra.mxu0 0.0
          %279 = vmatprep.subr.mxu0 0.0
          %280 = vmatpush1.msra.mxu0 0.0
          %281 = vmatprep.subr.mxu0 0.0
          %282 = vmatpush1.msra.mxu0 0.0
          %283 = vmatprep.subr.mxu0 0.0
          %284 = vmatpush1.msra.mxu0 0.0
          %285 = vmatprep.subr.mxu0 0.0
          %286 = vmatpush1.msra.mxu0 0.0
          %287 = vmatprep.subr.mxu0 0.0
          %288 = vmatpush1.msra.mxu0 0.0
          %289 = vmatprep.subr.mxu0 0.0
          %290 = vmatpush1.msra.mxu0 0.0
          %291 = vmatprep.subr.mxu0 0.0
          %292 = vmatpush1.msra.mxu0 0.0
          %293 = vmatprep.subr.mxu0 0.0
          %294 = vmatpush1.msra.mxu0 0.0
          %295 = vmatprep.subr.mxu0 0.0
          %296 = vmatpush1.msra.mxu0 0.0
          %297 = vmatprep.subr.mxu0 0.0
          %298 = vmatpush1.msra.mxu0 0.0
          %299 = vmatprep.subr.mxu0 0.0
          %300 = vmatpush1.msra.mxu0 0.0
          %301 = vmatprep.subr.mxu0 0.0
          %302 = vmatpush1.msra.mxu0 0.0
          %303 = vmatprep.subr.mxu0 0.0
          %304 = vmatpush1.msra.mxu0 0.0
          %305 = vmatprep.subr.mxu0 0.0
          %306 = vmatpush1.msra.mxu0 0.0
          %307 = vmatprep.subr.mxu0 0.0
          %308 = vmatpush1.msra.mxu0 0.0
          %309 = vmatprep.subr.mxu0 0.0
          %310 = vmatpush1.msra.mxu0 0.0
          %311 = vmatprep.subr.mxu0 0.0
          %312 = vmatpush1.msra.mxu0 0.0
          %313 = vmatprep.subr.mxu0 0.0
          %314 = vmatpush1.msra.mxu0 0.0
          %315 = vmatprep.subr.mxu0 0.0
          %316 = vmatpush1.msra.mxu0 0.0
          %317 = vmatprep.subr.mxu0 0.0
          %318 = vmatpush1.msra.mxu0 0.0
          %319 = vmatprep.subr.mxu0 0.0
          %320 = vmatpush1.msra.mxu0 0.0
          %321 = vmatprep.subr.mxu0 0.0
          %322 = vmatpush1.msra.mxu0 0.0
          %323 = vmatprep.subr.mxu0 0.0
          %324 = vmatpush1.msra.mxu0 0.0
          %325 = vmatprep.mubr.f32.mxu0 0.0
          %326 = vmatmul.mubr.f32.gmra.mrb[0].mxu0 %v256
          %v327 = vpop.f32.mrb[0].mxu0
          %v328 = vadd.f32 0.0, %v327
          %v329 = vpop.f32.mrb[0].mxu0
          %330 = vmatprep.mubr.f32.mxu0 0.0
          %331 = vmatmul.mubr.f32.gmra.mrb[0].mxu0 %v259
          %v332 = vpop.f32.mrb[0].mxu0
          %v333 = vadd.f32 0.0, %v332
          %v334 = vpop.f32.mrb[0].mxu0
          %335 = vdwg.mxu0
          %vm336 = vcmask 261120
          %337 = vst.msk [vmem:[#allocation2] sm:$0xff] %vm336, %v328
          %338 = vst.msk [vmem:[#allocation2 + $0x8] sm:$0xff] %vm336, %v333
        $region40: #{tpu_custom_call.1} parent=35 // pred_fallthru
          _
        %v339 = vld [vmem:[%s244] sm:$0xff]
        %v340 = vld [vmem:[%s244 + $0x8] sm:$0xff]
        %v341 = vld [vmem:[#allocation2] sm:$0xff]
        %v342 = vld [vmem:[#allocation2 + $0x8] sm:$0xff]
        %v343 = vld [vmem:[%s3] sm:$0x1]
        %v345 = vlaneseq
        %v346 = vshrl.u32 %v345, 7
        %v347 = vsub.s32 0, %v346
        %v348 = vrot.slane %v343, %v347
        %vm350 = vcmask 130048
        %v352 = vsel %vm350, %v339, 0
        %v355 = vsel %vm350, %v340, 0
        %357 = vmatprep.subr.mxu0 0.0
        %358 = vmatpush1.msra.mxu0 %v341
        %359 = vmatprep.subr.mxu0 0.0
        %360 = vmatpush1.msra.mxu0 %v342
        %361 = vmatprep.subr.mxu0 0.0
        %362 = vmatpush1.msra.mxu0 0.0
        %363 = vmatprep.subr.mxu0 0.0
        %364 = vmatpush1.msra.mxu0 0.0
        %365 = vmatprep.subr.mxu0 0.0
        %366 = vmatpush1.msra.mxu0 0.0
        %367 = vmatprep.subr.mxu0 0.0
        %368 = vmatpush1.msra.mxu0 0.0
        %369 = vmatprep.subr.mxu0 0.0
        %370 = vmatpush1.msra.mxu0 0.0
        %371 = vmatprep.subr.mxu0 0.0
        %372 = vmatpush1.msra.mxu0 0.0
        %373 = vmatprep.subr.mxu0 0.0
        %374 = vmatpush1.msra.mxu0 0.0
        %375 = vmatprep.subr.mxu0 0.0
        %376 = vmatpush1.msra.mxu0 0.0
        %377 = vmatprep.subr.mxu0 0.0
        %378 = vmatpush1.msra.mxu0 0.0
        %379 = vmatprep.subr.mxu0 0.0
        %380 = vmatpush1.msra.mxu0 0.0
        %381 = vmatprep.subr.mxu0 0.0
        %382 = vmatpush1.msra.mxu0 0.0
        %383 = vmatprep.subr.mxu0 0.0
        %384 = vmatpush1.msra.mxu0 0.0
        %385 = vmatprep.subr.mxu0 0.0
        %386 = vmatpush1.msra.mxu0 0.0
        %387 = vmatprep.subr.mxu0 0.0
        %388 = vmatpush1.msra.mxu0 0.0
        %389 = vmatprep.subr.mxu0 0.0
        %390 = vmatpush1.msra.mxu0 0.0
        %391 = vmatprep.subr.mxu0 0.0
        %392 = vmatpush1.msra.mxu0 0.0
        %393 = vmatprep.subr.mxu0 0.0
        %394 = vmatpush1.msra.mxu0 0.0
        %395 = vmatprep.subr.mxu0 0.0
        %396 = vmatpush1.msra.mxu0 0.0
        %397 = vmatprep.subr.mxu0 0.0
        %398 = vmatpush1.msra.mxu0 0.0
        %399 = vmatprep.subr.mxu0 0.0
        %400 = vmatpush1.msra.mxu0 0.0
        %401 = vmatprep.subr.mxu0 0.0
        %402 = vmatpush1.msra.mxu0 0.0
        %403 = vmatprep.subr.mxu0 0.0
        %404 = vmatpush1.msra.mxu0 0.0
        %405 = vmatprep.subr.mxu0 0.0
        %406 = vmatpush1.msra.mxu0 0.0
        %407 = vmatprep.subr.mxu0 0.0
        %408 = vmatpush1.msra.mxu0 0.0
        %409 = vmatprep.subr.mxu0 0.0
        %410 = vmatpush1.msra.mxu0 0.0
        %411 = vmatprep.subr.mxu0 0.0
        %412 = vmatpush1.msra.mxu0 0.0
        %413 = vmatprep.subr.mxu0 0.0
        %414 = vmatpush1.msra.mxu0 0.0
        %415 = vmatprep.subr.mxu0 0.0
        %416 = vmatpush1.msra.mxu0 0.0
        %417 = vmatprep.subr.mxu0 0.0
        %418 = vmatpush1.msra.mxu0 0.0
        %419 = vmatprep.subr.mxu0 0.0
        %420 = vmatpush1.msra.mxu0 0.0
        %421 = vmatprep.mubr.f32.mxu0 0.0
        %422 = vmatmul.mubr.f32.gmra.mrb[0].mxu0 %v352
        %v423 = vpop.f32.mrb[0].mxu0
        %v424 = vadd.f32 %v348, %v423
        %v425 = vpop.f32.mrb[0].mxu0
        %426 = vmatprep.mubr.f32.mxu0 0.0
        %427 = vmatmul.mubr.f32.gmra.mrb[0].mxu0 %v355
        %v428 = vpop.f32.mrb[0].mxu0
        %v429 = vadd.f32 %v348, %v428
        %v430 = vpop.f32.mrb[0].mxu0
        %431 = vdwg.mxu0
        %vm432 = vcmask 261120
        %433 = vst.msk [vmem:[%s230] sm:$0xff] %vm432, %v424
        %434 = vst.msk [vmem:[%s230 + $0x8] sm:$0xff] %vm432, %v429
        %s435 = sand.u32 %s136, 1
        %s436 = scalar_lea.sflag [#allocation4], %s435
        %s437 = sand.u32 %s136, 1
        %s438 = smul.addr %s437, 16
        %s439 = scalar_lea.vmem [#allocation3], %s438
        // Predicated region
        $region41: #{tpu_custom_call.1} parent=35 // pred_check
          %p440 = pneg %p146
        $region42: #{tpu_custom_call.1} parent=35 // pred_check_branch
          %442 = sbr.rel (%p440) target = $region44
        $region43: #{tpu_custom_call.1} parent=35 // pred_region
          %s443 = smul.u32 2, %s23
          %s445 = ssub.s32 256, 256
          %446 = vsyncadd %s436, %s445
          %s447 = smul.addr %s22, 2
          %s448 = sadd.s32 %s443, %s447
          %s449 = smul.addr %s448, 128
          %s450 = scalar_lea.hbm %s4, %s449
          %s451 = sshll.u32 %s439, 4
          %s452 = int_to_ptr.vmem [resolvable:$true] %s451
          %457 = dma.vmem_to_hbm [thread:$0]  %s452, 256, %s450, %s436, 128, 128, 8
        $region44: #{tpu_custom_call.1} parent=35 // pred_fallthru
          _
      $region36: #{tpu_custom_call.1} parent=5 // pred_fallthru
        _
      %p458 = scmp.le.s32.totalorder 2, %s13
      // Predicated region
      $region45: #{tpu_custom_call.1} parent=5 // pred_check
        %p459 = pneg %p458
      $region46: #{tpu_custom_call.1} parent=5 // pred_check_branch
        %461 = sbr.rel (%p459) target = $region48
      $region47: #{tpu_custom_call.1} parent=5 // pred_region
        %s462 = ssub.s32 %s13, 2
        // Predicated region
        $region49: #{tpu_custom_call.1} parent=47 // pred_check
          %p463 = pneg %p152
        $region50: #{tpu_custom_call.1} parent=47 // pred_check_branch
          %465 = sbr.rel (%p463) target = $region52
        $region51: #{tpu_custom_call.1} parent=47 // pred_region
          %s466 = sand.u32 %s137, 1
          %s467 = scalar_lea.sflag [#allocation4], %s466
          %s468 = sand.u32 %s137, 1
          %s469 = smul.addr %s468, 16
          %s470 = scalar_lea.vmem [#allocation3], %s469
          %471 = dma.done %s467, 256
        $region52: #{tpu_custom_call.1} parent=47 // pred_fallthru
          _
      $region48: #{tpu_custom_call.1} parent=5 // pred_fallthru
        _
    $region6: #{tpu_custom_call.1} parent=1 // loop_footer
      %s17 = sadd.s32 1, %s13
    $region7: #{tpu_custom_call.1} parent=1 // loop_footer_branch
      %12 = sbr.rel target = $region3
    $region8: #{tpu_custom_call.1} parent=1 // loop_exit
      _
    %472 = vsyncpa [#allocation4], 1
    %s473 = scalar_lea.sflag [#allocation4], 1
    %474 = vsyncpa %s473, 1

</llo_original>
